<compile_context>
chip_gen: v5e
topology: v5e:2x2
jax: 0.10.0
libtpu: 0.0.40
codegen_flags: <defaults>
</compile_context>

<pallas_src>
import jax
import jax.numpy as jnp
from jax.experimental import pallas as pl
from jax.experimental.pallas import tpu as pltpu


# --------------------------------------------------------------------------- #
# Kernel
# --------------------------------------------------------------------------- #
def _make_ve_kernel(C, has_mask):
    """One (Bt, C, Pt) tile of the VE-diffusion training loss.

    VMEM refs : x, noise[, mask]    -> (Bt, C, Pt) streams (any float dtype)
                sigma (Bt,1,1), emb (Bt,C,1), w (1,C,C)   -> f32 side inputs
    Outputs   : per-tile sum((noise*mask + pred)^2) [and sum(mask)] broadcast
                into a (1, 1, 128) block.
    """

    def kernel(*refs):
        if has_mask:
            x_ref, n_ref, m_ref, sig_ref, emb_ref, w_ref, sq_ref, ms_ref = refs
        else:
            x_ref, n_ref, sig_ref, emb_ref, w_ref, sq_ref = refs

        x = x_ref[...].astype(jnp.float32)        # (Bt, C, Pt)
        noise = n_ref[...].astype(jnp.float32)    # (Bt, C, Pt)
        sigma = sig_ref[...]                      # (Bt, 1, 1)  f32
        emb = emb_ref[...]                        # (Bt, C, 1)  f32
        w = w_ref[...]                            # (1, C, C)   f32

        if has_mask:
            mask = m_ref[...].astype(jnp.float32)
            nm = noise * mask
        else:
            nm = noise                            # default all-ones mask

        # forward: x_noisy = x + sigma * noise * mask   (full-tile op)
        x_noisy = x + sigma * nm

        # Simplified loss term: diff/sigma = noise*mask + pred, where
        #   pred[:, o, :] = sum_c w[o, c] * x_noisy[:, c, :] + emb[:, o]
        # (1x1 conv + bias/time/class embedding of the synthetic net).
        # C is tiny (4): keep it on the VPU as C broadcast-FMAs; revisit a
        # jnp.dot shaped (Bt*Pt, C) x (C, C) only if C grows to ~64-128.
        # TODO(synk): dynamic_threshold > 0 (quantile clip) not implemented;
        # clip() is the identity for the default dynamic_threshold == 0.0.
        d = nm + emb                              # (Bt, C, Pt)
        for c in range(C):
            d = d + w[:, :, c:c + 1] * x_noisy[:, c:c + 1, :]

        sq_ref[...] = jnp.broadcast_to(jnp.sum(d * d), sq_ref.shape)
        if has_mask:
            ms_ref[...] = jnp.broadcast_to(jnp.sum(mask), ms_ref.shape)

    return kernel


# --------------------------------------------------------------------------- #
# Generation-aware tiling
# --------------------------------------------------------------------------- #
def _chip_config():
    kind = ""
    try:
        kind = jax.devices()[0].device_kind.lower()
    except Exception:
        pass
    if "v7" in kind:
        # 2 TensorCores, 64 MiB physical VMEM: tighter double-buffer budget.
        return {"cores": 2, "vmem_limit": 40 << 20, "tile_budget": 18 << 20}
    cores = 2 if any(t in kind for t in ("v3", "v4", "v5p")) else 1
    return {"cores": cores, "vmem_limit": 64 << 20, "tile_budget": 36 << 20}


def _padded_block_bytes(bt, c, pt, dtypes):
    """VMEM bytes of one (bt, c, pt) block per stream, with sublane padding."""
    total = 0
    for dt in dtypes:
        item = jnp.dtype(dt).itemsize
        sub_pack = 8 * (4 // item)                 # 8 (f32), 16 (bf16), 32 (i8)
        c_pad = -(-c // sub_pack) * sub_pack
        total += bt * c_pad * pt * item
    return total


def _stream_bytes(bt, c, pt, dtypes):
    return sum(bt * c * pt * jnp.dtype(dt).itemsize for dt in dtypes)


def _divisors_desc(n):
    return [d for d in range(n, 0, -1) if n % d == 0]


def _pick_tiles(B, C, P_pad, stream_dtypes, cores, tile_budget, target_bytes=6 << 20):
    """Choose (Bt, Pt): the largest lane-dense tiles that (a) keep the
    double-buffered working set under the generation VMEM budget, (b) stream
    ~target_bytes per grid step, and (c) leave >= `cores` grid steps on
    multi-TensorCore chips (no forced split on 1-TC v5e/v6e)."""
    pt_cands = [128 * d for d in _divisors_desc(P_pad // 128)]   # descending
    bt_cands = _divisors_desc(B)                                 # descending

    pt = pt_cands[-1]
    for cand in pt_cands:
        if 2 * _padded_block_bytes(1, C, cand, stream_dtypes) <= tile_budget:
            pt = cand
            break

    bt = 1
    for cand in bt_cands:
        if (2 * _padded_block_bytes(cand, C, pt, stream_dtypes) <= tile_budget
                and _stream_bytes(cand, C, pt, stream_dtypes) <= target_bytes):
            bt = cand
            break

    def steps(bt_, pt_):
        return (B // bt_) * (P_pad // pt_)

    while cores > 1 and steps(bt, pt) < cores:
        smaller_bt = [d for d in bt_cands if d < bt]
        smaller_pt = [p for p in pt_cands if p < pt]
        if smaller_bt:
            bt = smaller_bt[0]
        elif smaller_pt:
            pt = smaller_pt[0]
        else:
            break
    return bt, pt


# --------------------------------------------------------------------------- #
# Wrapper
# --------------------------------------------------------------------------- #
def ve_diffusion_loss(x, x_classes, noise, x_mask, sigmas, params, *,
                      stream_dtype=jnp.float32, mask_dtype=jnp.bfloat16):
    """VEDiffusion.forward (training loss) with a synthetic 1x1-conv denoiser.

    x_mask=None means the default all-ones mask (fast path: the mask stream is
    never read and sum(mask) is analytic).  stream_dtype=jnp.bfloat16 halves
    the HBM traffic of the x/noise streams (in-kernel math stays f32).
    mask_dtype defaults to bf16, which is lossless for {0,1} masks.
    """
    B, C, H, W = x.shape
    P = H * W
    has_mask = x_mask is not None

    # Lane-dense pixel axis: zero-pad P to a multiple of 128.  Padded pixels
    # (x = noise = mask = 0) contribute emb^2 each to the squared sum; that is
    # subtracted analytically below so the loss stays exact.
    P_pad = int(pl.cdiv(P, 128)) * 128
    pad = P_pad - P

    x3 = x.reshape(B, C, P).astype(stream_dtype)
    n3 = noise.reshape(B, C, P).astype(stream_dtype)
    if pad:
        x3 = jnp.pad(x3, ((0, 0), (0, 0), (0, pad)))
        n3 = jnp.pad(n3, ((0, 0), (0, 0), (0, pad)))
    if has_mask:
        m3 = x_mask.reshape(B, C, P).astype(mask_dtype)
        if pad:
            m3 = jnp.pad(m3, ((0, 0), (0, 0), (0, pad)))

    # glue: per-batch additive embedding of the synthetic denoiser net
    # (conv bias + time(c_noise) embedding + class embedding), shape (B, C).
    c_noise = jnp.log(0.5 * sigmas)
    emb = (params["bias"][None, :]
           + params["w_time"][None, :] * c_noise[:, None]
           + params["b_time"][None, :]
           + params["class_table"][x_classes]).astype(jnp.float32)

    sig3 = sigmas.astype(jnp.float32).reshape(B, 1, 1)
    emb3 = emb.reshape(B, C, 1)
    w3 = params["w_conv"].astype(jnp.float32).reshape(1, C, C)

    cfg = _chip_config()
    stream_dtypes = [stream_dtype, stream_dtype] + ([mask_dtype] if has_mask else [])
    Bt, Pt = _pick_tiles(B, C, P_pad, stream_dtypes, cfg["cores"], cfg["tile_budget"])
    nb, npix = B // Bt, P_pad // Pt
    n_tiles = nb * npix

    big_spec = pl.BlockSpec((Bt, C, Pt), lambda i, j: (i, 0, j))
    sig_spec = pl.BlockSpec((Bt, 1, 1), lambda i, j: (i, 0, 0))
    emb_spec = pl.BlockSpec((Bt, C, 1), lambda i, j: (i, 0, 0))
    w_spec = pl.BlockSpec((1, C, C), lambda i, j: (0, 0, 0))
    out_spec = pl.BlockSpec((1, 1, 128), lambda i, j: (i * npix + j, 0, 0))

    inputs = [x3, n3] + ([m3] if has_mask else []) + [sig3, emb3, w3]
    in_specs = ([big_spec, big_spec] + ([big_spec] if has_mask else [])
                + [sig_spec, emb_spec, w_spec])

    part_shape = jax.ShapeDtypeStruct((n_tiles, 1, 128), jnp.float32)
    if has_mask:
        out_shape = (part_shape, part_shape)
        out_specs = (out_spec, out_spec)
    else:
        out_shape = part_shape
        out_specs = out_spec

    result = pl.pallas_call(
        _make_ve_kernel(C, has_mask),
        out_shape=out_shape,
        grid=(nb, npix),
        in_specs=in_specs,
        out_specs=out_specs,
        compiler_params=pltpu.CompilerParams(
            dimension_semantics=("parallel", "parallel"),
            vmem_limit_bytes=cfg["vmem_limit"]),
    )(*inputs)

    if has_mask:
        sq_tiles, ms_tiles = result
        total_mask = jnp.sum(ms_tiles[:, 0, 0])
    else:
        sq_tiles = result
        total_mask = jnp.float32(B * C * P)
    total_sq = jnp.sum(sq_tiles[:, 0, 0])
    if pad:
        # padded pixels: diff/sigma == emb there -> remove their contribution
        total_sq = total_sq - jnp.float32(pad) * jnp.sum(emb ** 2)

    # loss = mean_b( sum_sq_b / sigma_b^2 / sum(mask) ) == total_sq / (B * sum(mask))
    return total_sq / (total_mask * jnp.float32(B))


# --------------------------------------------------------------------------- #
# Pure-JAX reference mirroring the PyTorch forward semantics (NCHW)
# --------------------------------------------------------------------------- #
def ve_diffusion_loss_reference(x, x_classes, noise, x_mask, sigmas, params):
    if x_mask is None:
        x_mask = jnp.ones_like(x)
    sig = sigmas[:, None, None, None]
    x_noisy = x + sig * noise * x_mask
    c_noise = jnp.log(0.5 * sigmas)
    emb = (params["bias"][None, :]
           + params["w_time"][None, :] * c_noise[:, None]
           + params["b_time"][None, :]
           + params["class_table"][x_classes])
    pred = (jnp.einsum("oc,bchw->bohw", params["w_conv"], x_noisy,
                       precision=jax.lax.Precision.HIGHEST)
            + emb[:, :, None, None])
    x_den = x_noisy + sig * pred                           # c_skip=1, c_out=sigma
    losses = jnp.sum((x_den - x) ** 2, axis=(1, 2, 3))     # mse 'none' + sum b...->b
    losses = losses * (1.0 / sigmas ** 2) / jnp.sum(x_mask)
    return jnp.mean(losses)


# --------------------------------------------------------------------------- #
if __name__ == "__main__":
    B, C, H, W = 2, 4, 16, 16
    num_classes = 10

    key = jax.random.PRNGKey(0)
    kx, kn, kc, ks, km, kw, kb, kwt, kbt, kct = jax.random.split(key, 10)

    x = jax.random.normal(kx, (B, C, H, W), jnp.float32)
    noise = jax.random.normal(kn, (B, C, H, W), jnp.float32)   # torch.randn_like(x)
    x_classes = jax.random.randint(kc, (B,), 0, num_classes)
    # synthetic sigma distribution (log-uniform), deterministic
    sigmas = jnp.exp(jax.random.uniform(ks, (B,), jnp.float32,
                                        jnp.log(0.5), jnp.log(3.0)))
    rand_mask = (jax.random.uniform(km, (B, C, H, W)) > 0.3).astype(jnp.float32)

    # deterministic synthetic denoiser-net parameters
    params = {
        "w_conv": 0.3 * jax.random.normal(kw, (C, C), jnp.float32),
        "bias": 0.1 * jax.random.normal(kb, (C,), jnp.float32),
        "w_time": 0.05 * jax.random.normal(kwt, (C,), jnp.float32),
        "b_time": 0.02 * jax.random.normal(kbt, (C,), jnp.float32),
        "class_table": 0.1 * jax.random.normal(kct, (num_classes, C), jnp.float32),
    }

    # 1) fast path: default all-ones mask (x_mask is None), f32 streams (exact)
    loss_fast = jax.block_until_ready(
        ve_diffusion_loss(x, x_classes, noise, None, sigmas, params))
    ref_fast = ve_diffusion_loss_reference(x, x_classes, noise, None, sigmas, params)
    assert jnp.isfinite(loss_fast), loss_fast
    assert jnp.allclose(loss_fast, ref_fast, rtol=1e-4, atol=1e-6), (loss_fast, ref_fast)

    # 2) general path: explicit {0,1} mask (streamed as bf16 -> lossless)
    loss_m = jax.block_until_ready(
        ve_diffusion_loss(x, x_classes, noise, rand_mask, sigmas, params))
    ref_m = ve_diffusion_loss_reference(x, x_classes, noise, rand_mask, sigmas, params)
    assert jnp.isfinite(loss_m), loss_m
    assert jnp.allclose(loss_m, ref_m, rtol=1e-4, atol=1e-6), (loss_m, ref_m)

    # 3) bandwidth-optimized path: bf16 input streams, f32 in-kernel math
    loss_bf16 = jax.block_until_ready(
        ve_diffusion_loss(x, x_classes, noise, None, sigmas, params,
                          stream_dtype=jnp.bfloat16))
    assert jnp.isfinite(loss_bf16), loss_bf16
    assert jnp.allclose(loss_bf16, ref_fast, rtol=3e-2, atol=1e-4), (loss_bf16, ref_fast)

    print("KERNEL_OK")
</pallas_src>

<mosaic_0001>
module attributes {stable_mosaic.version = 11 : i64} {
  func.func @kernel(%arg0: i32, %arg1: i32, %arg2: memref<2x4x256xf32, #tpu.memory_space<vmem>>, %arg3: memref<2x4x256xf32, #tpu.memory_space<vmem>>, %arg4: memref<2x1x1xf32, #tpu.memory_space<vmem>>, %arg5: memref<2x4x1xf32, #tpu.memory_space<vmem>>, %arg6: memref<1x4x4xf32, #tpu.memory_space<vmem>>, %arg7: memref<1x1x128xf32, #tpu.memory_space<vmem>>) attributes {dimension_semantics = [#tpu.dimension_semantics<parallel>, #tpu.dimension_semantics<parallel>], iteration_bounds = array<i64: 1, 1>, scalar_prefetch = 0 : i64, scratch_operands = 0 : i64, tpu.core_type = #tpu.core_type<tc>, window_params = [{transform_indices = @transform_0, window_bounds = array<i64: 2, 4, 256>}, {transform_indices = @transform_1, window_bounds = array<i64: 2, 4, 256>}, {transform_indices = @transform_2, window_bounds = array<i64: 2, 1, 1>}, {transform_indices = @transform_3, window_bounds = array<i64: 2, 4, 1>}, {pipeline_mode = #tpu.pipeline_mode<synchronous>, transform_indices = @transform_4, window_bounds = array<i64: 1, 4, 4>}, {transform_indices = @transform_5, window_bounds = array<i64: 1, 1, 128>}]} {
    %c0 = arith.constant 0 : index
    %c0_0 = arith.constant 0 : index
    %c0_1 = arith.constant 0 : index
    %0 = vector.load %arg2[%c0, %c0_0, %c0_1] : memref<2x4x256xf32, #tpu.memory_space<vmem>>, vector<2x4x256xf32>
    %c0_2 = arith.constant 0 : index
    %c0_3 = arith.constant 0 : index
    %c0_4 = arith.constant 0 : index
    %1 = vector.load %arg3[%c0_2, %c0_3, %c0_4] : memref<2x4x256xf32, #tpu.memory_space<vmem>>, vector<2x4x256xf32>
    %c0_5 = arith.constant 0 : index
    %c0_6 = arith.constant 0 : index
    %c0_7 = arith.constant 0 : index
    %2 = vector.load %arg4[%c0_5, %c0_6, %c0_7] : memref<2x1x1xf32, #tpu.memory_space<vmem>>, vector<2x1x1xf32>
    %c0_8 = arith.constant 0 : index
    %c0_9 = arith.constant 0 : index
    %c0_10 = arith.constant 0 : index
    %3 = vector.load %arg5[%c0_8, %c0_9, %c0_10] : memref<2x4x1xf32, #tpu.memory_space<vmem>>, vector<2x4x1xf32>
    %c0_11 = arith.constant 0 : index
    %c0_12 = arith.constant 0 : index
    %c0_13 = arith.constant 0 : index
    %4 = vector.load %arg6[%c0_11, %c0_12, %c0_13] : memref<1x4x4xf32, #tpu.memory_space<vmem>>, vector<1x4x4xf32>
    %5 = vector.broadcast %2 : vector<2x1x1xf32> to vector<2x4x256xf32>
    %6 = arith.mulf %5, %1 : vector<2x4x256xf32>
    %7 = arith.addf %0, %6 : vector<2x4x256xf32>
    %8 = vector.broadcast %3 : vector<2x4x1xf32> to vector<2x4x256xf32>
    %9 = arith.addf %1, %8 : vector<2x4x256xf32>
    %10 = vector.extract_strided_slice %4 {offsets = [0, 0, 0], sizes = [1, 4, 1], strides = [1, 1, 1]} : vector<1x4x4xf32> to vector<1x4x1xf32>
    %11 = vector.extract_strided_slice %7 {offsets = [0, 0, 0], sizes = [2, 1, 256], strides = [1, 1, 1]} : vector<2x4x256xf32> to vector<2x1x256xf32>
    %12 = vector.broadcast %10 : vector<1x4x1xf32> to vector<2x4x256xf32>
    %13 = vector.broadcast %11 : vector<2x1x256xf32> to vector<2x4x256xf32>
    %14 = arith.mulf %12, %13 : vector<2x4x256xf32>
    %15 = arith.addf %9, %14 : vector<2x4x256xf32>
    %16 = vector.extract_strided_slice %4 {offsets = [0, 0, 1], sizes = [1, 4, 1], strides = [1, 1, 1]} : vector<1x4x4xf32> to vector<1x4x1xf32>
    %17 = vector.extract_strided_slice %7 {offsets = [0, 1, 0], sizes = [2, 1, 256], strides = [1, 1, 1]} : vector<2x4x256xf32> to vector<2x1x256xf32>
    %18 = vector.broadcast %16 : vector<1x4x1xf32> to vector<2x4x256xf32>
    %19 = vector.broadcast %17 : vector<2x1x256xf32> to vector<2x4x256xf32>
    %20 = arith.mulf %18, %19 : vector<2x4x256xf32>
    %21 = arith.addf %15, %20 : vector<2x4x256xf32>
    %22 = vector.extract_strided_slice %4 {offsets = [0, 0, 2], sizes = [1, 4, 1], strides = [1, 1, 1]} : vector<1x4x4xf32> to vector<1x4x1xf32>
    %23 = vector.extract_strided_slice %7 {offsets = [0, 2, 0], sizes = [2, 1, 256], strides = [1, 1, 1]} : vector<2x4x256xf32> to vector<2x1x256xf32>
    %24 = vector.broadcast %22 : vector<1x4x1xf32> to vector<2x4x256xf32>
    %25 = vector.broadcast %23 : vector<2x1x256xf32> to vector<2x4x256xf32>
    %26 = arith.mulf %24, %25 : vector<2x4x256xf32>
    %27 = arith.addf %21, %26 : vector<2x4x256xf32>
    %28 = vector.extract_strided_slice %4 {offsets = [0, 0, 3], sizes = [1, 4, 1], strides = [1, 1, 1]} : vector<1x4x4xf32> to vector<1x4x1xf32>
    %29 = vector.extract_strided_slice %7 {offsets = [0, 3, 0], sizes = [2, 1, 256], strides = [1, 1, 1]} : vector<2x4x256xf32> to vector<2x1x256xf32>
    %30 = vector.broadcast %28 : vector<1x4x1xf32> to vector<2x4x256xf32>
    %31 = vector.broadcast %29 : vector<2x1x256xf32> to vector<2x4x256xf32>
    %32 = arith.mulf %30, %31 : vector<2x4x256xf32>
    %33 = arith.addf %27, %32 : vector<2x4x256xf32>
    %34 = arith.mulf %33, %33 : vector<2x4x256xf32>
    %35 = vector.shape_cast %34 : vector<2x4x256xf32> to vector<1x2x4x256xf32>
    %cst = arith.constant dense<0.000000e+00> : vector<1xf32>
    %36 = vector.multi_reduction <add>, %35, %cst [1, 2, 3] : vector<1x2x4x256xf32> to vector<1xf32>
    %37 = vector.shape_cast %36 : vector<1xf32> to vector<1x1x1x1xf32>
    %38 = vector.extract %37[0, 0, 0, 0] : f32 from vector<1x1x1x1xf32>
    %39 = vector.broadcast %38 : f32 to vector<1x1x128xf32>
    %c0_14 = arith.constant 0 : index
    %c0_15 = arith.constant 0 : index
    %c0_16 = arith.constant 0 : index
    %40 = vector.load %arg7[%c0_14, %c0_15, %c0_16] : memref<1x1x128xf32, #tpu.memory_space<vmem>>, vector<1x1x128xf32>
    tpu.vector_store %arg7[%c0_14, %c0_15, %c0_16], %39 {strides = array<i32>} : memref<1x1x128xf32, #tpu.memory_space<vmem>>, vector<1x1x128xf32>,
    return
  }
  func.func @transform_0(%arg0: i32, %arg1: i32) -> (i32, i32, i32) {
    %c0_i32 = arith.constant 0 : i32
    %c0_i32_0 = arith.constant 0 : i32
    return %arg0, %c0_i32, %arg1 : i32, i32, i32
  }
  func.func @transform_1(%arg0: i32, %arg1: i32) -> (i32, i32, i32) {
    %c0_i32 = arith.constant 0 : i32
    %c0_i32_0 = arith.constant 0 : i32
    return %arg0, %c0_i32, %arg1 : i32, i32, i32
  }
  func.func @transform_2(%arg0: i32, %arg1: i32) -> (i32, i32, i32) {
    %c0_i32 = arith.constant 0 : i32
    %c0_i32_0 = arith.constant 0 : i32
    %c0_i32_1 = arith.constant 0 : i32
    return %arg0, %c0_i32, %c0_i32_0 : i32, i32, i32
  }
  func.func @transform_3(%arg0: i32, %arg1: i32) -> (i32, i32, i32) {
    %c0_i32 = arith.constant 0 : i32
    %c0_i32_0 = arith.constant 0 : i32
    %c0_i32_1 = arith.constant 0 : i32
    return %arg0, %c0_i32, %c0_i32_0 : i32, i32, i32
  }
  func.func @transform_4(%arg0: i32, %arg1: i32) -> (i32, i32, i32) {
    %c0_i32 = arith.constant 0 : i32
    %c0_i32_0 = arith.constant 0 : i32
    %c0_i32_1 = arith.constant 0 : i32
    %c0_i32_2 = arith.constant 0 : i32
    return %c0_i32, %c0_i32_0, %c0_i32_1 : i32, i32, i32
  }
  func.func @transform_5(%arg0: i32, %arg1: i32) -> (i32, i32, i32) {
    %c1_i32 = arith.constant 1 : i32
    %0 = arith.muli %arg0, %c1_i32 : i32
    %1 = arith.addi %0, %arg1 : i32
    %c0_i32 = arith.constant 0 : i32
    %c0_i32_0 = arith.constant 0 : i32
    %c0_i32_1 = arith.constant 0 : i32
    return %1, %c0_i32, %c0_i32_0 : i32, i32, i32
  }
}

</mosaic_0001>

<llo_original>
// kernel: tpu_custom_call.1
$region0: #{tpu_custom_call.1}
  #allocation0 [shape = 'u32[]', space=smem, size = 0x4, offset = 0x4, fixed_abs, tag = 'smem constant byte address 0x4 - core index']
  #allocation1 [shape = 'u32[72,128]{1,0:T(1,128)}', space=vmem, size = 0x9000, scoped, tag = 'internal scratch']
  %s0 = inlined_call_operand.hbm [shape: f32[2,4,256], index: 0, kind: input, shape index: {}]
  %s1 = inlined_call_operand.hbm [shape: f32[2,4,256], index: 1, kind: input, shape index: {}]
  %s2 = inlined_call_operand.vmem [shape: f32[2,1,1], index: 2, kind: input, shape index: {}]
  %s3 = inlined_call_operand.vmem [shape: f32[2,4,1], index: 3, kind: input, shape index: {}]
  %s4 = inlined_call_operand.vmem [shape: f32[1,4,4], index: 4, kind: input, shape index: {}]
  %s5 = inlined_call_operand.hbm [shape: f32[1,1,128], index: 5, kind: output, shape index: {}]
  %s6 = sld [smem:[#allocation0]]
  $region38: #{tpu_custom_call.1} parent=0
    _
  %s8 = ssub.s32 1, %s6
  %s9 = scalar_select 0, %s8, %s6
  $region1: #{tpu_custom_call.1} parent=0
    #allocation2 [shape = 'u8[8192]{0}', space=vmem, size = 0x2000, scoped, tag = 'input window, operand 0, single buffered']
    #allocation3 [shape = 's32[1]{0}', space=sflag, size = 0x4, scoped, tag = 'scoped memory for tpu_custom_call.1']
    #allocation4 [shape = 's32[1]{0}', space=sflag, size = 0x4, scoped, tag = 'scoped memory for tpu_custom_call.1']
    #allocation5 [shape = 'u8[8192]{0}', space=vmem, size = 0x2000, scoped, tag = 'input window, operand 1, single buffered']
    #allocation6 [shape = 's32[1]{0}', space=sflag, size = 0x4, scoped, tag = 'scoped memory for tpu_custom_call.1']
    #allocation7 [shape = 'u8[512]{0}', space=vmem, size = 0x400, scoped, tag = 'output window, operand 0, single buffered']
    %10 = vsyncpa [#allocation3], 0
    %11 = vsyncpa [#allocation6], 0
    %12 = vsyncpa [#allocation4], 0
    // Predicated region
    $region2: #{tpu_custom_call.1} parent=1 // pred_check
      _
    $region3: #{tpu_custom_call.1} parent=1 // pred_check_branch
      %14 = sbr.rel (0) target = $region5
    $region4: #{tpu_custom_call.1} parent=1 // pred_region
      %16 = vsyncadd [#allocation3], 0
      %s17 = sshll.u32 %s0, 4
      %s18 = int_to_ptr.hbm [resolvable:$true] %s17
      %s19 = sshll.u32 [#allocation2], 4
      %s20 = int_to_ptr.vmem [resolvable:$true] %s19
      %25 = dma.hbm_to_vmem [thread:$0]  %s18, 256, %s20, [#allocation3], 128, 128, 8
    $region5: #{tpu_custom_call.1} parent=1 // pred_fallthru
      _
    // Predicated region
    $region6: #{tpu_custom_call.1} parent=1 // pred_check
      _
    $region7: #{tpu_custom_call.1} parent=1 // pred_check_branch
      %27 = sbr.rel (0) target = $region9
    $region8: #{tpu_custom_call.1} parent=1 // pred_region
      %29 = vsyncadd [#allocation6], 0
      %s30 = sshll.u32 %s1, 4
      %s31 = int_to_ptr.hbm [resolvable:$true] %s30
      %s32 = sshll.u32 [#allocation5], 4
      %s33 = int_to_ptr.vmem [resolvable:$true] %s32
      %38 = dma.hbm_to_vmem [thread:$0]  %s31, 256, %s33, [#allocation6], 128, 128, 8
    $region9: #{tpu_custom_call.1} parent=1 // pred_fallthru
      _
    // Predicated region
    $region10: #{tpu_custom_call.1} parent=1 // pred_check
      _
    $region11: #{tpu_custom_call.1} parent=1 // pred_check_branch
      %40 = sbr.rel (0) target = $region13
    $region12: #{tpu_custom_call.1} parent=1 // pred_region
      _
    $region13: #{tpu_custom_call.1} parent=1 // pred_fallthru
      _
    // Predicated region
    $region14: #{tpu_custom_call.1} parent=1 // pred_check
      _
    $region15: #{tpu_custom_call.1} parent=1 // pred_check_branch
      %42 = sbr.rel (0) target = $region17
    $region16: #{tpu_custom_call.1} parent=1 // pred_region
      _
    $region17: #{tpu_custom_call.1} parent=1 // pred_fallthru
      _
    // Predicated region
    $region18: #{tpu_custom_call.1} parent=1 // pred_check
      _
    $region19: #{tpu_custom_call.1} parent=1 // pred_check_branch
      %44 = sbr.rel (0) target = $region21
    $region20: #{tpu_custom_call.1} parent=1 // pred_region
      _
    $region21: #{tpu_custom_call.1} parent=1 // pred_fallthru
      _
    // Predicated region
    $region22: #{tpu_custom_call.1} parent=1 // pred_check
      _
    $region23: #{tpu_custom_call.1} parent=1 // pred_check_branch
      %46 = sbr.rel (0) target = $region25
    $region24: #{tpu_custom_call.1} parent=1 // pred_region
      %48 = dma.done [#allocation3], 256
    $region25: #{tpu_custom_call.1} parent=1 // pred_fallthru
      _
    // Predicated region
    $region26: #{tpu_custom_call.1} parent=1 // pred_check
      _
    $region27: #{tpu_custom_call.1} parent=1 // pred_check_branch
      %50 = sbr.rel (0) target = $region29
    $region28: #{tpu_custom_call.1} parent=1 // pred_region
      %52 = dma.done [#allocation6], 256
    $region29: #{tpu_custom_call.1} parent=1 // pred_fallthru
      _
    %s53 = sadd.s32 0, 0
    %v54 = vld [vmem:[#allocation2] sm:$0xff]
    %v55 = vld [vmem:[#allocation2 + $0x8] sm:$0xff]
    %v56 = vld [vmem:[#allocation5] sm:$0xff]
    %v57 = vld [vmem:[#allocation5 + $0x8] sm:$0xff]
    %v58 = vld [vmem:[%s2] sm:$0x1]
    %v59 = vld [vmem:[%s2 + $0x1] sm:$0x1]
    %v60 = vld [vmem:[%s3] sm:$0xf]
    %v61 = vld [vmem:[%s3 + $0x4] sm:$0xf]
    %v62 = vld [vmem:[%s4] sm:$0xf]
    %v65 = vperm.slane %v58, 0
    %v66 = vperm.slane %v59, 0
    %67 = vset.pattern.permute.xlu0 0
    %68 = vperm.xlu0 %67, %v65
    %v69 = vpop.permute.xlu0 %68
    %71 = vset.pattern.permute.xlu0 0
    %72 = vperm.xlu0 %71, %v66
    %v73 = vpop.permute.xlu0 %72
    %v75 = vmul.f32 %v69, %v56
    %v76 = vmul.f32 %v73, %v57
    %v77 = vadd.f32 %v54, %v75
    %v78 = vadd.f32 %v55, %v76
    %80 = vset.pattern.permute.xlu0 0
    %81 = vperm.xlu0 %80, %v60
    %v82 = vpop.permute.xlu0 %81
    %84 = vset.pattern.permute.xlu0 0
    %85 = vperm.xlu0 %84, %v61
    %v86 = vpop.permute.xlu0 %85
    %v88 = vunpack.c.l.s4 839922192
    %v89 = vunpack.c.0.s8 %v88
    %v90 = vperm.slane %v82, %v89
    %v92 = vunpack.c.l.s4 839922192
    %v93 = vunpack.c.0.s8 %v92
    %v94 = vperm.slane %v86, %v93
    %v97 = vadd.f32 %v56, %v90
    %v98 = vadd.f32 %v57, %v94
    %100 = vset.pattern.permute.xlu0 0
    %101 = vperm.xlu0 %100, %v62
    %v102 = vpop.permute.xlu0 %101
    %v106 = vperm.slane %v77, 0
    %v107 = vperm.slane %v77, 4
    %v108 = vperm.slane %v78, 0
    %v109 = vperm.slane %v78, 4
    %v114 = vperm.slane %v106, 0
    %v115 = vperm.slane %v107, 0
    %v116 = vperm.slane %v108, 0
    %v117 = vperm.slane %v109, 0
    %v118 = vmul.f32 %v102, %v114
    %v119 = vmul.f32 %v102, %v115
    %v120 = vmul.f32 %v102, %v116
    %v121 = vmul.f32 %v102, %v117
    %v126 = vrot.slane %v119, 4
    %v127 = vrot.slane %v121, 4
    %vm128 = vcmask 1043456
    %v129 = vsel %vm128, %v118, %v126
    %v130 = vsel %vm128, %v120, %v127
    %v133 = vadd.f32 %v97, %v129
    %v134 = vadd.f32 %v98, %v130
    %135 = vset.pattern.permute.xlu0 1
    %136 = vperm.xlu0 %135, %v62
    %v137 = vpop.permute.xlu0 %136
    %v139 = vperm.slane %v77, 1
    %v140 = vperm.slane %v77, 5
    %v141 = vperm.slane %v78, 1
    %v142 = vperm.slane %v78, 5
    %v147 = vperm.slane %v139, 1
    %v148 = vperm.slane %v140, 1
    %v149 = vperm.slane %v141, 1
    %v150 = vperm.slane %v142, 1
    %v151 = vmul.f32 %v137, %v147
    %v152 = vmul.f32 %v137, %v148
    %v153 = vmul.f32 %v137, %v149
    %v154 = vmul.f32 %v137, %v150
    %v159 = vrot.slane %v152, 4
    %v160 = vrot.slane %v154, 4
    %v161 = vsel %vm128, %v151, %v159
    %v162 = vsel %vm128, %v153, %v160
    %v165 = vadd.f32 %v133, %v161
    %v166 = vadd.f32 %v134, %v162
    %167 = vset.pattern.permute.xlu0 2
    %168 = vperm.xlu0 %167, %v62
    %v169 = vpop.permute.xlu0 %168
    %v171 = vperm.slane %v77, 2
    %v172 = vperm.slane %v77, 6
    %v173 = vperm.slane %v78, 2
    %v174 = vperm.slane %v78, 6
    %v179 = vperm.slane %v171, 2
    %v180 = vperm.slane %v172, 2
    %v181 = vperm.slane %v173, 2
    %v182 = vperm.slane %v174, 2
    %v183 = vmul.f32 %v169, %v179
    %v184 = vmul.f32 %v169, %v180
    %v185 = vmul.f32 %v169, %v181
    %v186 = vmul.f32 %v169, %v182
    %v191 = vrot.slane %v184, 4
    %v192 = vrot.slane %v186, 4
    %v193 = vsel %vm128, %v183, %v191
    %v194 = vsel %vm128, %v185, %v192
    %v197 = vadd.f32 %v165, %v193
    %v198 = vadd.f32 %v166, %v194
    %199 = vset.pattern.permute.xlu0 3
    %200 = vperm.xlu0 %199, %v62
    %v201 = vpop.permute.xlu0 %200
    %v203 = vperm.slane %v77, 3
    %v204 = vperm.slane %v77, 7
    %v205 = vperm.slane %v78, 3
    %v206 = vperm.slane %v78, 7
    %v211 = vperm.slane %v203, 3
    %v212 = vperm.slane %v204, 3
    %v213 = vperm.slane %v205, 3
    %v214 = vperm.slane %v206, 3
    %v215 = vmul.f32 %v201, %v211
    %v216 = vmul.f32 %v201, %v212
    %v217 = vmul.f32 %v201, %v213
    %v218 = vmul.f32 %v201, %v214
    %v223 = vrot.slane %v216, 4
    %v224 = vrot.slane %v218, 4
    %v225 = vsel %vm128, %v215, %v223
    %v226 = vsel %vm128, %v217, %v224
    %v229 = vadd.f32 %v197, %v225
    %v230 = vadd.f32 %v198, %v226
    %v231 = vmul.f32 %v229, %v229
    %v232 = vmul.f32 %v230, %v230
    %235 = vst [vmem:[#allocation1] ss:$2 sm:$0xff] %v231
    %v236 = vld.sshfl [vmem:[#allocation1] sm:$0xff pattern:$0x75316420]
    %v237 = vld.sshfl [vmem:[#allocation1 + $0x8] sm:$0xff pattern:$0x75316420]
    %s238 = scalar_lea.vmem [#allocation1], 16
    %239 = vst [vmem:[%s238] ss:$2 sm:$0xff] %v232
    %v240 = vld.sshfl [vmem:[#allocation1 + $0x10] sm:$0xff pattern:$0x75316420]
    %v241 = vld.sshfl [vmem:[#allocation1 + $0x18] sm:$0xff pattern:$0x75316420]
    %v246 = vsel %vm128, %v236, 0.0
    %v247 = vsel %vm128, %v237, 0.0
    %v248 = vadd.f32 %v246, %v247
    %v249 = vsel %vm128, %v240, 0.0
    %v250 = vadd.f32 %v248, %v249
    %v251 = vsel %vm128, %v241, 0.0
    %v252 = vadd.f32 %v250, %v251
    %253 = vadd.xlane.f32.xlu0 %v252
    %v254 = vpop.xlane.xlu0 %253
    %v255 = vrot.slane %v254, 4
    %v256 = vadd.f32 %v254, %v255
    %v257 = vrot.slane %v256, 2
    %v258 = vadd.f32 %v256, %v257
    %v259 = vrot.slane %v258, 1
    %v260 = vadd.f32 %v258, %v259
    %s261 = vtos %v260
    %v262 = vstv %s261
    %263 = vst [vmem:[#allocation7] sm:$0x1] %v262
    // Predicated region
    $region30: #{tpu_custom_call.1} parent=1 // pred_check
      _
    $region31: #{tpu_custom_call.1} parent=1 // pred_check_branch
      %265 = sbr.rel (0) target = $region33
    $region32: #{tpu_custom_call.1} parent=1 // pred_region
      %s266 = sadd.s32 0, 0
      %268 = vsyncadd [#allocation4], 0
      %s269 = scalar_lea.hbm %s5, %s266
      %s271 = sshll.u32 [#allocation7], 4
      %s272 = int_to_ptr.vmem [resolvable:$true] %s271
      %s273 = sshll.u32 %s269, 4
      %s274 = int_to_ptr.hbm [resolvable:$true] %s273
      %276 = dma.vmem_to_hbm [thread:$0]  %s272, 16, %s274, [#allocation4]
    $region33: #{tpu_custom_call.1} parent=1 // pred_fallthru
      _
    // Predicated region
    $region34: #{tpu_custom_call.1} parent=1 // pred_check
      _
    $region35: #{tpu_custom_call.1} parent=1 // pred_check_branch
      %278 = sbr.rel (0) target = $region37
    $region36: #{tpu_custom_call.1} parent=1 // pred_region
      %280 = dma.done [#allocation4], 16
    $region37: #{tpu_custom_call.1} parent=1 // pred_fallthru
      _
    %281 = vsyncpa [#allocation3], 1
    %282 = vsyncpa [#allocation6], 1
    %283 = vsyncpa [#allocation4], 1

</llo_original>
